<compile_context>
chip_gen: v7x
topology: tpu7x:2x2x1
jax: 0.10.0
libtpu: 0.0.40
codegen_flags: <defaults>
</compile_context>

<pallas_src>
import functools
import math

import jax
import jax.numpy as jnp
from jax.experimental import pallas as pl
from jax.experimental.pallas import tpu as pltpu


def _openmax_kernel(x0_ref, mean_ref, logits_ref, wparams_ref, musq_ref,
                    out_ref, dot_acc, xsq_acc, *, alpha):
    """One grid step over a tile of the feature axis F.

    x0_ref:      (1, TF)  row-0 feature tile
    mean_ref:    (C, TF)  per-class mean tile
    logits_ref:  (B, C)   full logits (constant across the grid)
    wparams_ref: (3, C)   Weibull [shape; loc; scale] (constant)
    musq_ref:    (1, C)   precomputed ||mu_c||^2 (constant)
    out_ref:     (B, C)   OpenMax probabilities (written on the last step)
    dot_acc:     (1, C)   accumulator for x0 . mu_c
    xsq_acc:     (1, C)   accumulator for ||x0||^2 (replicated across lanes)
    """
    k = pl.program_id(0)

    @pl.when(k == 0)
    def _init():
        dot_acc[...] = jnp.zeros_like(dot_acc)
        xsq_acc[...] = jnp.zeros_like(xsq_acc)

    x0 = x0_ref[...]          # (1, TF) f32
    mu = mean_ref[...]        # (C, TF) f32

    # MXU contraction over the F tile of both operands (no transpose of mu).
    dot_acc[...] += jax.lax.dot_general(
        x0, mu,
        dimension_numbers=(((1,), (1,)), ((), ())),
        preferred_element_type=jnp.float32)                       # (1, C)
    # ||x0||^2 partial sum; (1,1) result broadcasts into the (1,C) accumulator.
    xsq_acc[...] += jnp.sum(x0 * x0, axis=1, keepdims=True)

    @pl.when(k == pl.num_programs(0) - 1)
    def _finalize():
        d2 = xsq_acc[...] + musq_ref[...] - 2.0 * dot_acc[...]    # (1, C)
        dists = jnp.sqrt(jnp.maximum(d2, 0.0))                    # (1, C)

        w_shape = wparams_ref[0:1, :]                             # (1, C)
        w_loc = wparams_ref[1:2, :]
        w_scale = wparams_ref[2:3, :]

        # scipy.stats.weibull_min.cdf(x, c, loc, scale)
        #   = 1 - exp(-((x - loc)/scale)^c) for x >= loc, else 0.
        # (Assumes w_shape > 0 and w_scale > 0, as a valid fit produces.)
        z = jnp.maximum((dists - w_loc) / w_scale, 0.0)
        w_cdf = 1.0 - jnp.exp(-(z ** w_shape))                    # (1, C)
        factor = 1.0 - w_cdf ** alpha   # alpha static int -> integer_pow chain

        scores = logits_ref[...] * factor                         # (B, C)
        # No max-subtraction (faithful to the torch code: can overflow for
        # |scores| >~ 88).  Exact divide keeps ~1e-5 agreement with the ref.
        exp_scores = jnp.exp(scores)
        out_ref[...] = exp_scores / jnp.sum(exp_scores, axis=1, keepdims=True)


def _choose_f_tile(F, C, vmem_budget_bytes=4 << 20):
    """Largest multiple-of-128 tile dividing F whose (C, TF) mean block
    (double-buffered f32) stays within a few MiB; falls back to full F."""
    if F % 128 != 0:
        return F
    cap_elems = max(128, vmem_budget_bytes // (2 * max(C, 1) * 4))
    tf = F
    while tf > cap_elems and tf % 256 == 0:
        tf //= 2
    return tf


def openmax_forward(logits, features, mean_vecs, weibull_params, *,
                    alpha=10, mean_sq_norms=None, f_tile=None):
    """Pallas implementation of OpenMaxLayer.forward / compute_openmax.

    mean_sq_norms: optional precomputed ||mu_c||^2, shape (1, C).  It is
      constant per fitted model and should be cached when fit_weibull runs;
      computed here as wrapper glue if not supplied.
    f_tile: optional override for the feature-axis tile (must divide F).
    """
    B = features.shape[0]
    F = math.prod(features.shape[1:])
    C = mean_vecs.shape[0]

    mean_vecs = mean_vecs.astype(jnp.float32)
    logits = logits.astype(jnp.float32)
    weibull_params = weibull_params.astype(jnp.float32)

    # Only batch row 0 feeds the Weibull factor (torch flatten-index quirk),
    # so only row 0 is DMA'd into the kernel.
    x0 = features.reshape(B, F)[0:1, :].astype(jnp.float32)        # (1, F)

    if mean_sq_norms is None:
        mean_sq_norms = jnp.sum(mean_vecs * mean_vecs, axis=1)[None, :]
    mean_sq_norms = mean_sq_norms.reshape(1, C).astype(jnp.float32)

    tf = f_tile if f_tile is not None else _choose_f_tile(F, C)
    assert F % tf == 0, (F, tf)
    grid = (F // tf,)

    kernel = functools.partial(_openmax_kernel, alpha=alpha)
    return pl.pallas_call(
        kernel,
        out_shape=jax.ShapeDtypeStruct((B, C), jnp.float32),
        grid_spec=pltpu.PrefetchScalarGridSpec(
            num_scalar_prefetch=0,
            grid=grid,
            in_specs=[
                pl.BlockSpec((1, tf), lambda k: (0, k)),   # x0 feature tile
                pl.BlockSpec((C, tf), lambda k: (0, k)),   # mean-vector tile
                pl.BlockSpec((B, C), lambda k: (0, 0)),    # logits (resident)
                pl.BlockSpec((3, C), lambda k: (0, 0)),    # Weibull params
                pl.BlockSpec((1, C), lambda k: (0, 0)),    # ||mu||^2
            ],
            out_specs=pl.BlockSpec((B, C), lambda k: (0, 0)),
            scratch_shapes=[
                pltpu.VMEM((1, C), jnp.float32),   # x0 . mu accumulator
                pltpu.VMEM((1, C), jnp.float32),   # ||x0||^2 accumulator
            ],
        ),
        compiler_params=pltpu.CompilerParams(
            dimension_semantics=("arbitrary",)),   # F is a reduction axis
    )(x0, mean_vecs, logits, weibull_params, mean_sq_norms)


def _reference(logits, features, mean_vecs, weibull_params, alpha=10):
    """Pure-jnp reference mirroring the torch semantics exactly."""
    B = features.shape[0]
    C = mean_vecs.shape[0]
    f = features.reshape(B, -1).astype(jnp.float32)
    dists = jnp.linalg.norm(f[:, None, :] - mean_vecs[None, :, :], axis=2).flatten()
    c = dists[:C]  # torch indexes dists[i] for i in range(C) -> batch-0 row
    shp, loc, scl = weibull_params[0], weibull_params[1], weibull_params[2]
    z = jnp.maximum((c - loc) / scl, 0.0)
    w_cdf = 1.0 - jnp.exp(-(z ** shp))
    scores = logits * (1.0 - w_cdf ** alpha)[None, :]
    e = jnp.exp(scores)
    return e / jnp.sum(e, axis=1, keepdims=True)


if __name__ == "__main__":
    # Small shapes consistent with the module: features (B, C_feat, H, W),
    # num_features = C_feat*H*W, num_classes = 8.
    B, C_feat, H, W = 2, 4, 16, 16
    num_features = C_feat * H * W            # 1024
    num_classes = 8
    alpha = 10

    key = jax.random.PRNGKey(0)
    k_feat, k_logit, k_mean = jax.random.split(key, 3)

    features = jax.random.normal(k_feat, (B, C_feat, H, W), dtype=jnp.float32)
    logits = jax.random.normal(k_logit, (B, num_classes), dtype=jnp.float32)

    # Deterministic synthetic "fitted" state (module __init__ only gives
    # shapes; fit_weibull would normally populate these).
    mean_vecs = 0.1 * jax.random.normal(k_mean, (num_classes, num_features),
                                        dtype=jnp.float32)
    w_shape = 1.5 + 0.1 * jnp.arange(num_classes, dtype=jnp.float32)
    w_loc = jnp.zeros((num_classes,), dtype=jnp.float32)
    w_scale = 40.0 + jnp.arange(num_classes, dtype=jnp.float32)
    weibull_params = jnp.stack([w_shape, w_loc, w_scale], axis=0)   # (3, C)

    # ||mu||^2 precomputed once alongside the fitted state (hoisted out of the
    # forward hot path per the perf review).
    mean_sq_norms = jnp.sum(mean_vecs * mean_vecs, axis=1)[None, :]

    ref = _reference(logits, features, mean_vecs, weibull_params, alpha=alpha)

    # 1) Default tile: single full-width F block (biggest tile that fits VMEM).
    probs = openmax_forward(logits, features, mean_vecs, weibull_params,
                            alpha=alpha, mean_sq_norms=mean_sq_norms)
    probs = jax.block_until_ready(probs)
    assert probs.shape == (B, num_classes)
    assert jnp.allclose(probs, ref, rtol=1e-4, atol=1e-5), (probs, ref)

    # 2) Forced small tile exercises the multi-step F-grid accumulator path
    #    (the configuration needed when F scales, e.g. on v7x's smaller VMEM).
    probs_tiled = openmax_forward(logits, features, mean_vecs, weibull_params,
                                  alpha=alpha, mean_sq_norms=mean_sq_norms,
                                  f_tile=256)
    probs_tiled = jax.block_until_ready(probs_tiled)
    assert jnp.allclose(probs_tiled, ref, rtol=1e-4, atol=1e-5), (probs_tiled, ref)

    # TODO(synk): fit_weibull (scipy weibull_min.fit on sorted training-tail
    # distances) is a host-side fitting routine, not part of the forward pass.

    print("KERNEL_OK")
</pallas_src>

<mosaic_0001>
module attributes {stable_mosaic.version = 11 : i64} {
  func.func @_openmax_kernel(%arg0: i32, %arg1: memref<1x1024xf32, #tpu.memory_space<vmem>>, %arg2: memref<8x1024xf32, #tpu.memory_space<vmem>>, %arg3: memref<2x8xf32, #tpu.memory_space<vmem>>, %arg4: memref<3x8xf32, #tpu.memory_space<vmem>>, %arg5: memref<1x8xf32, #tpu.memory_space<vmem>>, %arg6: memref<2x8xf32, #tpu.memory_space<vmem>>, %arg7: memref<1x8xf32, #tpu.memory_space<vmem>>, %arg8: memref<1x8xf32, #tpu.memory_space<vmem>>) attributes {dimension_semantics = [#tpu.dimension_semantics<arbitrary>], iteration_bounds = array<i64: 1>, scalar_prefetch = 0 : i64, scratch_operands = 2 : i64, tpu.core_type = #tpu.core_type<tc>, window_params = [{transform_indices = @transform_0, window_bounds = array<i64: 1, 1024>}, {transform_indices = @transform_1, window_bounds = array<i64: 8, 1024>}, {pipeline_mode = #tpu.pipeline_mode<synchronous>, transform_indices = @transform_2, window_bounds = array<i64: 2, 8>}, {pipeline_mode = #tpu.pipeline_mode<synchronous>, transform_indices = @transform_3, window_bounds = array<i64: 3, 8>}, {pipeline_mode = #tpu.pipeline_mode<synchronous>, transform_indices = @transform_4, window_bounds = array<i64: 1, 8>}, {pipeline_mode = #tpu.pipeline_mode<synchronous>, transform_indices = @transform_5, window_bounds = array<i64: 2, 8>}]} {
    %c0_i32 = arith.constant 0 : i32
    %0 = arith.cmpi eq, %arg0, %c0_i32 : i32
    %1 = arith.extui %0 : i1 to i32
    %c0_i32_0 = arith.constant 0 : i32
    %2 = arith.cmpi ne, %1, %c0_i32_0 : i32
    scf.if %2 {
      %cst_15 = arith.constant 0.000000e+00 : f32
      %19 = vector.broadcast %cst_15 : f32 to vector<1x8xf32>
      %c0_16 = arith.constant 0 : index
      %c0_17 = arith.constant 0 : index
      %20 = vector.load %arg7[%c0_16, %c0_17] : memref<1x8xf32, #tpu.memory_space<vmem>>, vector<1x8xf32>
      tpu.vector_store %arg7[%c0_16, %c0_17], %19 {strides = array<i32>} : memref<1x8xf32, #tpu.memory_space<vmem>>, vector<1x8xf32>,
      %cst_18 = arith.constant 0.000000e+00 : f32
      %21 = vector.broadcast %cst_18 : f32 to vector<1x8xf32>
      %c0_19 = arith.constant 0 : index
      %c0_20 = arith.constant 0 : index
      %22 = vector.load %arg8[%c0_19, %c0_20] : memref<1x8xf32, #tpu.memory_space<vmem>>, vector<1x8xf32>
      tpu.vector_store %arg8[%c0_19, %c0_20], %21 {strides = array<i32>} : memref<1x8xf32, #tpu.memory_space<vmem>>, vector<1x8xf32>,
    } else {
    }
    %c0 = arith.constant 0 : index
    %c0_1 = arith.constant 0 : index
    %3 = vector.load %arg1[%c0, %c0_1] : memref<1x1024xf32, #tpu.memory_space<vmem>>, vector<1x1024xf32>
    %c0_2 = arith.constant 0 : index
    %c0_3 = arith.constant 0 : index
    %4 = vector.load %arg2[%c0_2, %c0_3] : memref<8x1024xf32, #tpu.memory_space<vmem>>, vector<8x1024xf32>
    %c0_4 = arith.constant 0 : index
    %c0_5 = arith.constant 0 : index
    %5 = vector.load %arg7[%c0_4, %c0_5] : memref<1x8xf32, #tpu.memory_space<vmem>>, vector<1x8xf32>
    %cst = arith.constant dense<0.000000e+00> : vector<1x8xf32>
    %6 = tpu.matmul %3, %4, %cst {dimension_numbers = #tpu.dot_dimension_numbers<[1], [1], [0], [0], [0, 0, 1, 0], [], []>} : vector<1x1024xf32>, vector<8x1024xf32>, vector<1x8xf32> -> vector<1x8xf32>
    %7 = arith.addf %5, %6 : vector<1x8xf32>
    %c0_6 = arith.constant 0 : index
    %c0_7 = arith.constant 0 : index
    %8 = vector.load %arg7[%c0_6, %c0_7] : memref<1x8xf32, #tpu.memory_space<vmem>>, vector<1x8xf32>
    tpu.vector_store %arg7[%c0_6, %c0_7], %7 {strides = array<i32>} : memref<1x8xf32, #tpu.memory_space<vmem>>, vector<1x8xf32>,
    %c0_8 = arith.constant 0 : index
    %c0_9 = arith.constant 0 : index
    %9 = vector.load %arg8[%c0_8, %c0_9] : memref<1x8xf32, #tpu.memory_space<vmem>>, vector<1x8xf32>
    %10 = arith.mulf %3, %3 : vector<1x1024xf32>
    %cst_10 = arith.constant dense<0.000000e+00> : vector<1xf32>
    %11 = vector.multi_reduction <add>, %10, %cst_10 [1] : vector<1x1024xf32> to vector<1xf32>
    %12 = vector.shape_cast %11 : vector<1xf32> to vector<1x1xf32>
    %13 = vector.broadcast %12 : vector<1x1xf32> to vector<1x8xf32>
    %14 = arith.addf %9, %13 : vector<1x8xf32>
    %c0_11 = arith.constant 0 : index
    %c0_12 = arith.constant 0 : index
    %15 = vector.load %arg8[%c0_11, %c0_12] : memref<1x8xf32, #tpu.memory_space<vmem>>, vector<1x8xf32>
    tpu.vector_store %arg8[%c0_11, %c0_12], %14 {strides = array<i32>} : memref<1x8xf32, #tpu.memory_space<vmem>>, vector<1x8xf32>,
    %c0_i32_13 = arith.constant 0 : i32
    %16 = arith.cmpi eq, %arg0, %c0_i32_13 : i32
    %17 = arith.extui %16 : i1 to i32
    %c0_i32_14 = arith.constant 0 : i32
    %18 = arith.cmpi ne, %17, %c0_i32_14 : i32
    scf.if %18 {
      %c0_15 = arith.constant 0 : index
      %c0_16 = arith.constant 0 : index
      %19 = vector.load %arg8[%c0_15, %c0_16] : memref<1x8xf32, #tpu.memory_space<vmem>>, vector<1x8xf32>
      %c0_17 = arith.constant 0 : index
      %c0_18 = arith.constant 0 : index
      %20 = vector.load %arg5[%c0_17, %c0_18] : memref<1x8xf32, #tpu.memory_space<vmem>>, vector<1x8xf32>
      %21 = arith.addf %19, %20 : vector<1x8xf32>
      %c0_19 = arith.constant 0 : index
      %c0_20 = arith.constant 0 : index
      %22 = vector.load %arg7[%c0_19, %c0_20] : memref<1x8xf32, #tpu.memory_space<vmem>>, vector<1x8xf32>
      %cst_21 = arith.constant 2.000000e+00 : f32
      %23 = vector.broadcast %cst_21 : f32 to vector<1x8xf32>
      %24 = arith.mulf %23, %22 : vector<1x8xf32>
      %25 = arith.subf %21, %24 : vector<1x8xf32>
      %cst_22 = arith.constant 0.000000e+00 : f32
      %26 = vector.broadcast %cst_22 : f32 to vector<1x8xf32>
      %27 = arith.maximumf %25, %26 : vector<1x8xf32>
      %28 = math.sqrt %27 : vector<1x8xf32>
      %c0_23 = arith.constant 0 : index
      %c0_24 = arith.constant 0 : index
      %29 = vector.load %arg4[%c0_23, %c0_24] : memref<3x8xf32, #tpu.memory_space<vmem>>, vector<1x8xf32>
      %c1 = arith.constant 1 : index
      %c0_25 = arith.constant 0 : index
      %30 = vector.load %arg4[%c1, %c0_25] : memref<3x8xf32, #tpu.memory_space<vmem>>, vector<1x8xf32>
      %c2 = arith.constant 2 : index
      %c0_26 = arith.constant 0 : index
      %31 = vector.load %arg4[%c2, %c0_26] : memref<3x8xf32, #tpu.memory_space<vmem>>, vector<1x8xf32>
      %32 = arith.subf %28, %30 : vector<1x8xf32>
      %33 = arith.divf %32, %31 : vector<1x8xf32>
      %cst_27 = arith.constant 0.000000e+00 : f32
      %34 = vector.broadcast %cst_27 : f32 to vector<1x8xf32>
      %35 = arith.maximumf %33, %34 : vector<1x8xf32>
      %36 = math.powf %35, %29 : vector<1x8xf32>
      %cst_28 = arith.constant 0.000000e+00 : f32
      %37 = vector.broadcast %cst_28 : f32 to vector<1x8xf32>
      %38 = arith.subf %37, %36 : vector<1x8xf32>
      %39 = math.exp %38 : vector<1x8xf32>
      %cst_29 = arith.constant 1.000000e+00 : f32
      %40 = vector.broadcast %cst_29 : f32 to vector<1x8xf32>
      %41 = arith.subf %40, %39 : vector<1x8xf32>
      %42 = arith.mulf %41, %41 : vector<1x8xf32>
      %43 = arith.mulf %42, %42 : vector<1x8xf32>
      %44 = arith.mulf %43, %43 : vector<1x8xf32>
      %45 = arith.mulf %42, %44 : vector<1x8xf32>
      %cst_30 = arith.constant 1.000000e+00 : f32
      %46 = vector.broadcast %cst_30 : f32 to vector<1x8xf32>
      %47 = arith.subf %46, %45 : vector<1x8xf32>
      %c0_31 = arith.constant 0 : index
      %c0_32 = arith.constant 0 : index
      %48 = vector.load %arg3[%c0_31, %c0_32] : memref<2x8xf32, #tpu.memory_space<vmem>>, vector<2x8xf32>
      %49 = vector.broadcast %47 : vector<1x8xf32> to vector<2x8xf32>
      %50 = arith.mulf %48, %49 : vector<2x8xf32>
      %51 = math.exp %50 : vector<2x8xf32>
      %cst_33 = arith.constant dense<0.000000e+00> : vector<2xf32>
      %52 = vector.multi_reduction <add>, %51, %cst_33 [1] : vector<2x8xf32> to vector<2xf32>
      %53 = vector.shape_cast %52 : vector<2xf32> to vector<2x1xf32>
      %54 = vector.broadcast %53 : vector<2x1xf32> to vector<2x8xf32>
      %55 = arith.divf %51, %54 : vector<2x8xf32>
      %c0_34 = arith.constant 0 : index
      %c0_35 = arith.constant 0 : index
      %56 = vector.load %arg6[%c0_34, %c0_35] : memref<2x8xf32, #tpu.memory_space<vmem>>, vector<2x8xf32>
      tpu.vector_store %arg6[%c0_34, %c0_35], %55 {strides = array<i32>} : memref<2x8xf32, #tpu.memory_space<vmem>>, vector<2x8xf32>,
    } else {
    }
    return
  }
  func.func @transform_0(%arg0: i32) -> (i32, i32) {
    %c0_i32 = arith.constant 0 : i32
    %c0_i32_0 = arith.constant 0 : i32
    return %c0_i32, %arg0 : i32, i32
  }
  func.func @transform_1(%arg0: i32) -> (i32, i32) {
    %c0_i32 = arith.constant 0 : i32
    %c0_i32_0 = arith.constant 0 : i32
    return %c0_i32, %arg0 : i32, i32
  }
  func.func @transform_2(%arg0: i32) -> (i32, i32) {
    %c0_i32 = arith.constant 0 : i32
    %c0_i32_0 = arith.constant 0 : i32
    %c0_i32_1 = arith.constant 0 : i32
    return %c0_i32, %c0_i32_0 : i32, i32
  }
  func.func @transform_3(%arg0: i32) -> (i32, i32) {
    %c0_i32 = arith.constant 0 : i32
    %c0_i32_0 = arith.constant 0 : i32
    %c0_i32_1 = arith.constant 0 : i32
    return %c0_i32, %c0_i32_0 : i32, i32
  }
  func.func @transform_4(%arg0: i32) -> (i32, i32) {
    %c0_i32 = arith.constant 0 : i32
    %c0_i32_0 = arith.constant 0 : i32
    %c0_i32_1 = arith.constant 0 : i32
    return %c0_i32, %c0_i32_0 : i32, i32
  }
  func.func @transform_5(%arg0: i32) -> (i32, i32) {
    %c0_i32 = arith.constant 0 : i32
    %c0_i32_0 = arith.constant 0 : i32
    %c0_i32_1 = arith.constant 0 : i32
    return %c0_i32, %c0_i32_0 : i32, i32
  }
}

</mosaic_0001>

<llo_original>
// kernel: tpu_custom_call.1
$region0: #{tpu_custom_call.1}
  #allocation0 [shape = 'u32[]', space=smem, size = 0x4, offset = 0x4, fixed_abs, tag = 'smem constant byte address 0x4 - core index']
  #allocation1 [shape = 'u32[144,128]{1,0:T(1,128)}', space=vmem, size = 0x12000, scoped, tag = 'internal scratch']
  #allocation2 [shape = 'f32[1,8]{1,0:T(1,128)}', space=vmem, size = 0x200, scoped, tag = 'scratch operand']
  #allocation3 [shape = 'f32[1,8]{1,0:T(1,128)}', space=vmem, size = 0x200, scoped, tag = 'scratch operand']
  %s0 = inlined_call_operand.hbm [shape: f32[1,1024], index: 0, kind: input, shape index: {}]
  %s1 = inlined_call_operand.hbm [shape: f32[8,1024], index: 1, kind: input, shape index: {}]
  %s2 = inlined_call_operand.vmem [shape: f32[2,8], index: 2, kind: input, shape index: {}]
  %s3 = inlined_call_operand.vmem [shape: f32[3,8], index: 3, kind: input, shape index: {}]
  %s4 = inlined_call_operand.vmem [shape: f32[1,8], index: 4, kind: input, shape index: {}]
  %s5 = inlined_call_operand.hbm [shape: f32[2,8], index: 5, kind: output, shape index: {}]
  %s6 = sld [smem:[#allocation0]]
  $region46: #{tpu_custom_call.1} parent=0
    _
  %s8 = ssub.s32 1, %s6
  %s9 = scalar_select 0, %s8, %s6
  $region1: #{tpu_custom_call.1} parent=0
    #allocation4 [shape = 'u8[4096]{0}', space=vmem, size = 0x1000, scoped, tag = 'input window, operand 0, single buffered']
    #allocation5 [shape = 's32[1]{0}', space=sflag, size = 0x4, scoped, tag = 'scoped memory for tpu_custom_call.1']
    #allocation6 [shape = 's32[1]{0}', space=sflag, size = 0x4, scoped, tag = 'scoped memory for tpu_custom_call.1']
    #allocation7 [shape = 'u8[32768]{0}', space=vmem, size = 0x8000, scoped, tag = 'input window, operand 1, single buffered']
    #allocation8 [shape = 's32[1]{0}', space=sflag, size = 0x4, scoped, tag = 'scoped memory for tpu_custom_call.1']
    #allocation9 [shape = 'u8[1024]{0}', space=vmem, size = 0x400, scoped, tag = 'output window, operand 0, single buffered']
    %10 = vsyncpa [#allocation5], 0
    %11 = vsyncpa [#allocation8], 0
    %12 = vsyncpa [#allocation6], 0
    // Predicated region
    $region2: #{tpu_custom_call.1} parent=1 // pred_check
      _
    $region3: #{tpu_custom_call.1} parent=1 // pred_check_branch
      %14 = sbr.rel (0) target = $region5
    $region4: #{tpu_custom_call.1} parent=1 // pred_region
      %s16 = ssub.s32 128, 128
      %17 = vsyncadd [#allocation5], %s16
      %s19 = sshll.u32 [#allocation4], 4
      %s20 = int_to_ptr.vmem [resolvable:$true] %s19
      %22 = dma.hbm_to_vmem [thread:$0]  %s0, 128, %s20, [#allocation5]
    $region5: #{tpu_custom_call.1} parent=1 // pred_fallthru
      _
    // Predicated region
    $region6: #{tpu_custom_call.1} parent=1 // pred_check
      _
    $region7: #{tpu_custom_call.1} parent=1 // pred_check_branch
      %24 = sbr.rel (0) target = $region9
    $region8: #{tpu_custom_call.1} parent=1 // pred_region
      %s26 = ssub.s32 1024, 1024
      %27 = vsyncadd [#allocation8], %s26
      %s29 = sshll.u32 [#allocation7], 4
      %s30 = int_to_ptr.vmem [resolvable:$true] %s29
      %32 = dma.hbm_to_vmem [thread:$0]  %s1, 1024, %s30, [#allocation8]
    $region9: #{tpu_custom_call.1} parent=1 // pred_fallthru
      _
    // Predicated region
    $region10: #{tpu_custom_call.1} parent=1 // pred_check
      _
    $region11: #{tpu_custom_call.1} parent=1 // pred_check_branch
      %34 = sbr.rel (0) target = $region13
    $region12: #{tpu_custom_call.1} parent=1 // pred_region
      _
    $region13: #{tpu_custom_call.1} parent=1 // pred_fallthru
      _
    // Predicated region
    $region14: #{tpu_custom_call.1} parent=1 // pred_check
      _
    $region15: #{tpu_custom_call.1} parent=1 // pred_check_branch
      %36 = sbr.rel (0) target = $region17
    $region16: #{tpu_custom_call.1} parent=1 // pred_region
      _
    $region17: #{tpu_custom_call.1} parent=1 // pred_fallthru
      _
    // Predicated region
    $region18: #{tpu_custom_call.1} parent=1 // pred_check
      _
    $region19: #{tpu_custom_call.1} parent=1 // pred_check_branch
      %38 = sbr.rel (0) target = $region21
    $region20: #{tpu_custom_call.1} parent=1 // pred_region
      _
    $region21: #{tpu_custom_call.1} parent=1 // pred_fallthru
      _
    // Predicated region
    $region22: #{tpu_custom_call.1} parent=1 // pred_check
      _
    $region23: #{tpu_custom_call.1} parent=1 // pred_check_branch
      %40 = sbr.rel (0) target = $region25
    $region24: #{tpu_custom_call.1} parent=1 // pred_region
      %41 = dma.done [#allocation5], 128
    $region25: #{tpu_custom_call.1} parent=1 // pred_fallthru
      _
    // Predicated region
    $region26: #{tpu_custom_call.1} parent=1 // pred_check
      _
    $region27: #{tpu_custom_call.1} parent=1 // pred_check_branch
      %43 = sbr.rel (0) target = $region29
    $region28: #{tpu_custom_call.1} parent=1 // pred_region
      %44 = dma.done [#allocation8], 1024
    $region29: #{tpu_custom_call.1} parent=1 // pred_fallthru
      _
    %p45 = scmp.eq.s32.totalorder 0, 0
    // Predicated region
    $region30: #{tpu_custom_call.1} parent=1 // pred_check
      %p46 = pneg %p45
    $region31: #{tpu_custom_call.1} parent=1 // pred_check_branch
      %48 = sbr.rel (%p46) target = $region33
    $region32: #{tpu_custom_call.1} parent=1 // pred_region
      %vm49 = vcmask 57344
      %50 = vst.msk [vmem:[#allocation2] sm:$0x1] %vm49, 0.0
      %51 = vst.msk [vmem:[#allocation3] sm:$0x1] %vm49, 0.0
    $region33: #{tpu_custom_call.1} parent=1 // pred_fallthru
      _
    %v52 = vld [vmem:[#allocation4] sm:$0xff]
    %v53 = vld [vmem:[#allocation7] sm:$0xff]
    %v54 = vld [vmem:[#allocation7 + $0x8] sm:$0xff]
    %v55 = vld [vmem:[#allocation7 + $0x10] sm:$0xff]
    %v56 = vld [vmem:[#allocation7 + $0x18] sm:$0xff]
    %v57 = vld [vmem:[#allocation7 + $0x20] sm:$0xff]
    %v58 = vld [vmem:[#allocation7 + $0x28] sm:$0xff]
    %v59 = vld [vmem:[#allocation7 + $0x30] sm:$0xff]
    %v60 = vld [vmem:[#allocation7 + $0x38] sm:$0xff]
    %v61 = vld [vmem:[#allocation2] sm:$0x1]
    %v63 = vlaneseq
    %v64 = vshrl.u32 %v63, 7
    %v65 = vsub.s32 0, %v64
    %v66 = vrot.slane %v52, %v65
    %v67 = vlaneseq
    %v68 = vshrl.u32 %v67, 7
    %v69 = vsub.s32 1, %v68
    %v70 = vrot.slane %v52, %v69
    %v71 = vlaneseq
    %v72 = vshrl.u32 %v71, 7
    %v73 = vsub.s32 2, %v72
    %v74 = vrot.slane %v52, %v73
    %v75 = vlaneseq
    %v76 = vshrl.u32 %v75, 7
    %v77 = vsub.s32 3, %v76
    %v78 = vrot.slane %v52, %v77
    %v79 = vlaneseq
    %v80 = vshrl.u32 %v79, 7
    %v81 = vsub.s32 4, %v80
    %v82 = vrot.slane %v52, %v81
    %v83 = vlaneseq
    %v84 = vshrl.u32 %v83, 7
    %v85 = vsub.s32 5, %v84
    %v86 = vrot.slane %v52, %v85
    %v87 = vlaneseq
    %v88 = vshrl.u32 %v87, 7
    %v89 = vsub.s32 6, %v88
    %v90 = vrot.slane %v52, %v89
    %v91 = vlaneseq
    %v92 = vshrl.u32 %v91, 7
    %v93 = vsub.s32 7, %v92
    %v94 = vrot.slane %v52, %v93
    %103 = vmatprep.subr.mxu0 %v54
    %104 = vmatpush1.xpose.msra.mxu0 %v53
    %105 = vmatprep.subr.mxu0 0.0
    %106 = vmatpush1.xpose.msra.mxu0 0.0
    %107 = vmatprep.subr.mxu0 0.0
    %108 = vmatpush1.xpose.msra.mxu0 0.0
    %109 = vmatprep.subr.mxu0 0.0
    %110 = vmatpush1.xpose.msra.mxu0 0.0
    %111 = vmatprep.subr.mxu0 0.0
    %112 = vmatpush1.xpose.msra.mxu0 0.0
    %113 = vmatprep.subr.mxu0 0.0
    %114 = vmatpush1.xpose.msra.mxu0 0.0
    %115 = vmatprep.subr.mxu0 0.0
    %116 = vmatpush1.xpose.msra.mxu0 0.0
    %117 = vmatprep.subr.mxu0 0.0
    %118 = vmatpush1.xpose.msra.mxu0 0.0
    %119 = vmatprep.subr.mxu0 0.0
    %120 = vmatpush1.xpose.msra.mxu0 0.0
    %121 = vmatprep.subr.mxu0 0.0
    %122 = vmatpush1.xpose.msra.mxu0 0.0
    %123 = vmatprep.subr.mxu0 0.0
    %124 = vmatpush1.xpose.msra.mxu0 0.0
    %125 = vmatprep.subr.mxu0 0.0
    %126 = vmatpush1.xpose.msra.mxu0 0.0
    %127 = vmatprep.subr.mxu0 0.0
    %128 = vmatpush1.xpose.msra.mxu0 0.0
    %129 = vmatprep.subr.mxu0 0.0
    %130 = vmatpush1.xpose.msra.mxu0 0.0
    %131 = vmatprep.subr.mxu0 0.0
    %132 = vmatpush1.xpose.msra.mxu0 0.0
    %133 = vmatprep.subr.mxu0 0.0
    %134 = vmatpush1.xpose.msra.mxu0 0.0
    %135 = vmatprep.subr.mxu0 0.0
    %136 = vmatpush1.xpose.msra.mxu0 0.0
    %137 = vmatprep.subr.mxu0 0.0
    %138 = vmatpush1.xpose.msra.mxu0 0.0
    %139 = vmatprep.subr.mxu0 0.0
    %140 = vmatpush1.xpose.msra.mxu0 0.0
    %141 = vmatprep.subr.mxu0 0.0
    %142 = vmatpush1.xpose.msra.mxu0 0.0
    %143 = vmatprep.subr.mxu0 0.0
    %144 = vmatpush1.xpose.msra.mxu0 0.0
    %145 = vmatprep.subr.mxu0 0.0
    %146 = vmatpush1.xpose.msra.mxu0 0.0
    %147 = vmatprep.subr.mxu0 0.0
    %148 = vmatpush1.xpose.msra.mxu0 0.0
    %149 = vmatprep.subr.mxu0 0.0
    %150 = vmatpush1.xpose.msra.mxu0 0.0
    %151 = vmatprep.subr.mxu0 0.0
    %152 = vmatpush1.xpose.msra.mxu0 0.0
    %153 = vmatprep.subr.mxu0 0.0
    %154 = vmatpush1.xpose.msra.mxu0 0.0
    %155 = vmatprep.subr.mxu0 0.0
    %156 = vmatpush1.xpose.msra.mxu0 0.0
    %157 = vmatprep.subr.mxu0 0.0
    %158 = vmatpush1.xpose.msra.mxu0 0.0
    %159 = vmatprep.subr.mxu0 0.0
    %160 = vmatpush1.xpose.msra.mxu0 0.0
    %161 = vmatprep.subr.mxu0 0.0
    %162 = vmatpush1.xpose.msra.mxu0 0.0
    %163 = vmatprep.subr.mxu0 0.0
    %164 = vmatpush1.xpose.msra.mxu0 0.0
    %165 = vmatprep.subr.mxu0 0.0
    %166 = vmatpush1.xpose.msra.mxu0 0.0
    %167 = vmatprep.mubr.f32.mxu0 %v70
    %168 = vmatmul.mubr.f32.gmra.mrb[0].mxu0 %v66
    %v169 = vpop.f32.mrb[0].mxu0
    %v170 = vadd.f32 0.0, %v169
    %v171 = vpop.f32.mrb[0].mxu0
    %172 = vdwg.mxu0
    %173 = vmatprep.subr.mxu0 %v56
    %174 = vmatpush1.xpose.msra.mxu0 %v55
    %175 = vmatprep.subr.mxu0 0.0
    %176 = vmatpush1.xpose.msra.mxu0 0.0
    %177 = vmatprep.subr.mxu0 0.0
    %178 = vmatpush1.xpose.msra.mxu0 0.0
    %179 = vmatprep.subr.mxu0 0.0
    %180 = vmatpush1.xpose.msra.mxu0 0.0
    %181 = vmatprep.subr.mxu0 0.0
    %182 = vmatpush1.xpose.msra.mxu0 0.0
    %183 = vmatprep.subr.mxu0 0.0
    %184 = vmatpush1.xpose.msra.mxu0 0.0
    %185 = vmatprep.subr.mxu0 0.0
    %186 = vmatpush1.xpose.msra.mxu0 0.0
    %187 = vmatprep.subr.mxu0 0.0
    %188 = vmatpush1.xpose.msra.mxu0 0.0
    %189 = vmatprep.subr.mxu0 0.0
    %190 = vmatpush1.xpose.msra.mxu0 0.0
    %191 = vmatprep.subr.mxu0 0.0
    %192 = vmatpush1.xpose.msra.mxu0 0.0
    %193 = vmatprep.subr.mxu0 0.0
    %194 = vmatpush1.xpose.msra.mxu0 0.0
    %195 = vmatprep.subr.mxu0 0.0
    %196 = vmatpush1.xpose.msra.mxu0 0.0
    %197 = vmatprep.subr.mxu0 0.0
    %198 = vmatpush1.xpose.msra.mxu0 0.0
    %199 = vmatprep.subr.mxu0 0.0
    %200 = vmatpush1.xpose.msra.mxu0 0.0
    %201 = vmatprep.subr.mxu0 0.0
    %202 = vmatpush1.xpose.msra.mxu0 0.0
    %203 = vmatprep.subr.mxu0 0.0
    %204 = vmatpush1.xpose.msra.mxu0 0.0
    %205 = vmatprep.subr.mxu0 0.0
    %206 = vmatpush1.xpose.msra.mxu0 0.0
    %207 = vmatprep.subr.mxu0 0.0
    %208 = vmatpush1.xpose.msra.mxu0 0.0
    %209 = vmatprep.subr.mxu0 0.0
    %210 = vmatpush1.xpose.msra.mxu0 0.0
    %211 = vmatprep.subr.mxu0 0.0
    %212 = vmatpush1.xpose.msra.mxu0 0.0
    %213 = vmatprep.subr.mxu0 0.0
    %214 = vmatpush1.xpose.msra.mxu0 0.0
    %215 = vmatprep.subr.mxu0 0.0
    %216 = vmatpush1.xpose.msra.mxu0 0.0
    %217 = vmatprep.subr.mxu0 0.0
    %218 = vmatpush1.xpose.msra.mxu0 0.0
    %219 = vmatprep.subr.mxu0 0.0
    %220 = vmatpush1.xpose.msra.mxu0 0.0
    %221 = vmatprep.subr.mxu0 0.0
    %222 = vmatpush1.xpose.msra.mxu0 0.0
    %223 = vmatprep.subr.mxu0 0.0
    %224 = vmatpush1.xpose.msra.mxu0 0.0
    %225 = vmatprep.subr.mxu0 0.0
    %226 = vmatpush1.xpose.msra.mxu0 0.0
    %227 = vmatprep.subr.mxu0 0.0
    %228 = vmatpush1.xpose.msra.mxu0 0.0
    %229 = vmatprep.subr.mxu0 0.0
    %230 = vmatpush1.xpose.msra.mxu0 0.0
    %231 = vmatprep.subr.mxu0 0.0
    %232 = vmatpush1.xpose.msra.mxu0 0.0
    %233 = vmatprep.subr.mxu0 0.0
    %234 = vmatpush1.xpose.msra.mxu0 0.0
    %235 = vmatprep.subr.mxu0 0.0
    %236 = vmatpush1.xpose.msra.mxu0 0.0
    %237 = vmatprep.mubr.f32.mxu0 %v78
    %238 = vmatmul.mubr.f32.gmra.mrb[0].mxu0 %v74
    %v239 = vpop.f32.mrb[0].mxu0
    %v240 = vadd.f32 %v170, %v239
    %v241 = vpop.f32.mrb[0].mxu0
    %242 = vdwg.mxu0
    %243 = vmatprep.subr.mxu0 %v58
    %244 = vmatpush1.xpose.msra.mxu0 %v57
    %245 = vmatprep.subr.mxu0 0.0
    %246 = vmatpush1.xpose.msra.mxu0 0.0
    %247 = vmatprep.subr.mxu0 0.0
    %248 = vmatpush1.xpose.msra.mxu0 0.0
    %249 = vmatprep.subr.mxu0 0.0
    %250 = vmatpush1.xpose.msra.mxu0 0.0
    %251 = vmatprep.subr.mxu0 0.0
    %252 = vmatpush1.xpose.msra.mxu0 0.0
    %253 = vmatprep.subr.mxu0 0.0
    %254 = vmatpush1.xpose.msra.mxu0 0.0
    %255 = vmatprep.subr.mxu0 0.0
    %256 = vmatpush1.xpose.msra.mxu0 0.0
    %257 = vmatprep.subr.mxu0 0.0
    %258 = vmatpush1.xpose.msra.mxu0 0.0
    %259 = vmatprep.subr.mxu0 0.0
    %260 = vmatpush1.xpose.msra.mxu0 0.0
    %261 = vmatprep.subr.mxu0 0.0
    %262 = vmatpush1.xpose.msra.mxu0 0.0
    %263 = vmatprep.subr.mxu0 0.0
    %264 = vmatpush1.xpose.msra.mxu0 0.0
    %265 = vmatprep.subr.mxu0 0.0
    %266 = vmatpush1.xpose.msra.mxu0 0.0
    %267 = vmatprep.subr.mxu0 0.0
    %268 = vmatpush1.xpose.msra.mxu0 0.0
    %269 = vmatprep.subr.mxu0 0.0
    %270 = vmatpush1.xpose.msra.mxu0 0.0
    %271 = vmatprep.subr.mxu0 0.0
    %272 = vmatpush1.xpose.msra.mxu0 0.0
    %273 = vmatprep.subr.mxu0 0.0
    %274 = vmatpush1.xpose.msra.mxu0 0.0
    %275 = vmatprep.subr.mxu0 0.0
    %276 = vmatpush1.xpose.msra.mxu0 0.0
    %277 = vmatprep.subr.mxu0 0.0
    %278 = vmatpush1.xpose.msra.mxu0 0.0
    %279 = vmatprep.subr.mxu0 0.0
    %280 = vmatpush1.xpose.msra.mxu0 0.0
    %281 = vmatprep.subr.mxu0 0.0
    %282 = vmatpush1.xpose.msra.mxu0 0.0
    %283 = vmatprep.subr.mxu0 0.0
    %284 = vmatpush1.xpose.msra.mxu0 0.0
    %285 = vmatprep.subr.mxu0 0.0
    %286 = vmatpush1.xpose.msra.mxu0 0.0
    %287 = vmatprep.subr.mxu0 0.0
    %288 = vmatpush1.xpose.msra.mxu0 0.0
    %289 = vmatprep.subr.mxu0 0.0
    %290 = vmatpush1.xpose.msra.mxu0 0.0
    %291 = vmatprep.subr.mxu0 0.0
    %292 = vmatpush1.xpose.msra.mxu0 0.0
    %293 = vmatprep.subr.mxu0 0.0
    %294 = vmatpush1.xpose.msra.mxu0 0.0
    %295 = vmatprep.subr.mxu0 0.0
    %296 = vmatpush1.xpose.msra.mxu0 0.0
    %297 = vmatprep.subr.mxu0 0.0
    %298 = vmatpush1.xpose.msra.mxu0 0.0
    %299 = vmatprep.subr.mxu0 0.0
    %300 = vmatpush1.xpose.msra.mxu0 0.0
    %301 = vmatprep.subr.mxu0 0.0
    %302 = vmatpush1.xpose.msra.mxu0 0.0
    %303 = vmatprep.subr.mxu0 0.0
    %304 = vmatpush1.xpose.msra.mxu0 0.0
    %305 = vmatprep.subr.mxu0 0.0
    %306 = vmatpush1.xpose.msra.mxu0 0.0
    %307 = vmatprep.mubr.f32.mxu0 %v86
    %308 = vmatmul.mubr.f32.gmra.mrb[0].mxu0 %v82
    %v309 = vpop.f32.mrb[0].mxu0
    %v310 = vadd.f32 %v240, %v309
    %v311 = vpop.f32.mrb[0].mxu0
    %312 = vdwg.mxu0
    %313 = vmatprep.subr.mxu0 %v60
    %314 = vmatpush1.xpose.msra.mxu0 %v59
    %315 = vmatprep.subr.mxu0 0.0
    %316 = vmatpush1.xpose.msra.mxu0 0.0
    %317 = vmatprep.subr.mxu0 0.0
    %318 = vmatpush1.xpose.msra.mxu0 0.0
    %319 = vmatprep.subr.mxu0 0.0
    %320 = vmatpush1.xpose.msra.mxu0 0.0
    %321 = vmatprep.subr.mxu0 0.0
    %322 = vmatpush1.xpose.msra.mxu0 0.0
    %323 = vmatprep.subr.mxu0 0.0
    %324 = vmatpush1.xpose.msra.mxu0 0.0
    %325 = vmatprep.subr.mxu0 0.0
    %326 = vmatpush1.xpose.msra.mxu0 0.0
    %327 = vmatprep.subr.mxu0 0.0
    %328 = vmatpush1.xpose.msra.mxu0 0.0
    %329 = vmatprep.subr.mxu0 0.0
    %330 = vmatpush1.xpose.msra.mxu0 0.0
    %331 = vmatprep.subr.mxu0 0.0
    %332 = vmatpush1.xpose.msra.mxu0 0.0
    %333 = vmatprep.subr.mxu0 0.0
    %334 = vmatpush1.xpose.msra.mxu0 0.0
    %335 = vmatprep.subr.mxu0 0.0
    %336 = vmatpush1.xpose.msra.mxu0 0.0
    %337 = vmatprep.subr.mxu0 0.0
    %338 = vmatpush1.xpose.msra.mxu0 0.0
    %339 = vmatprep.subr.mxu0 0.0
    %340 = vmatpush1.xpose.msra.mxu0 0.0
    %341 = vmatprep.subr.mxu0 0.0
    %342 = vmatpush1.xpose.msra.mxu0 0.0
    %343 = vmatprep.subr.mxu0 0.0
    %344 = vmatpush1.xpose.msra.mxu0 0.0
    %345 = vmatprep.subr.mxu0 0.0
    %346 = vmatpush1.xpose.msra.mxu0 0.0
    %347 = vmatprep.subr.mxu0 0.0
    %348 = vmatpush1.xpose.msra.mxu0 0.0
    %349 = vmatprep.subr.mxu0 0.0
    %350 = vmatpush1.xpose.msra.mxu0 0.0
    %351 = vmatprep.subr.mxu0 0.0
    %352 = vmatpush1.xpose.msra.mxu0 0.0
    %353 = vmatprep.subr.mxu0 0.0
    %354 = vmatpush1.xpose.msra.mxu0 0.0
    %355 = vmatprep.subr.mxu0 0.0
    %356 = vmatpush1.xpose.msra.mxu0 0.0
    %357 = vmatprep.subr.mxu0 0.0
    %358 = vmatpush1.xpose.msra.mxu0 0.0
    %359 = vmatprep.subr.mxu0 0.0
    %360 = vmatpush1.xpose.msra.mxu0 0.0
    %361 = vmatprep.subr.mxu0 0.0
    %362 = vmatpush1.xpose.msra.mxu0 0.0
    %363 = vmatprep.subr.mxu0 0.0
    %364 = vmatpush1.xpose.msra.mxu0 0.0
    %365 = vmatprep.subr.mxu0 0.0
    %366 = vmatpush1.xpose.msra.mxu0 0.0
    %367 = vmatprep.subr.mxu0 0.0
    %368 = vmatpush1.xpose.msra.mxu0 0.0
    %369 = vmatprep.subr.mxu0 0.0
    %370 = vmatpush1.xpose.msra.mxu0 0.0
    %371 = vmatprep.subr.mxu0 0.0
    %372 = vmatpush1.xpose.msra.mxu0 0.0
    %373 = vmatprep.subr.mxu0 0.0
    %374 = vmatpush1.xpose.msra.mxu0 0.0
    %375 = vmatprep.subr.mxu0 0.0
    %376 = vmatpush1.xpose.msra.mxu0 0.0
    %377 = vmatprep.mubr.f32.mxu0 %v94
    %378 = vmatmul.mubr.f32.gmra.mrb[0].mxu0 %v90
    %v379 = vpop.f32.mrb[0].mxu0
    %v380 = vadd.f32 %v310, %v379
    %v381 = vpop.f32.mrb[0].mxu0
    %382 = vdwg.mxu0
    %v383 = vadd.f32 %v61, %v380
    %vm384 = vcmask 57344
    %385 = vst.msk [vmem:[#allocation2] sm:$0x1] %vm384, %v383
    %v386 = vld [vmem:[#allocation3] sm:$0x1]
    %v387 = vmul.f32 %v52, %v52
    %v389 = vlaneseq
    %v390 = vshrl.u32 %v389, 7
    %v391 = vsub.s32 0, %v390
    %v392 = vrot.slane %v387, %v391
    %v393 = vlaneseq
    %v394 = vshrl.u32 %v393, 7
    %v395 = vsub.s32 1, %v394
    %v396 = vrot.slane %v387, %v395
    %v397 = vlaneseq
    %v398 = vshrl.u32 %v397, 7
    %v399 = vsub.s32 2, %v398
    %v400 = vrot.slane %v387, %v399
    %v401 = vlaneseq
    %v402 = vshrl.u32 %v401, 7
    %v403 = vsub.s32 3, %v402
    %v404 = vrot.slane %v387, %v403
    %v405 = vlaneseq
    %v406 = vshrl.u32 %v405, 7
    %v407 = vsub.s32 4, %v406
    %v408 = vrot.slane %v387, %v407
    %v409 = vlaneseq
    %v410 = vshrl.u32 %v409, 7
    %v411 = vsub.s32 5, %v410
    %v412 = vrot.slane %v387, %v411
    %v413 = vlaneseq
    %v414 = vshrl.u32 %v413, 7
    %v415 = vsub.s32 6, %v414
    %v416 = vrot.slane %v387, %v415
    %v417 = vlaneseq
    %v418 = vshrl.u32 %v417, 7
    %v419 = vsub.s32 7, %v418
    %v420 = vrot.slane %v387, %v419
    %vm429 = vcmask 1040384
    %v430 = vsel %vm429, %v392, 0.0
    %v431 = vsel %vm429, %v396, 0.0
    %v432 = vadd.f32 %v430, %v431
    %v433 = vsel %vm429, %v400, 0.0
    %v434 = vadd.f32 %v432, %v433
    %v435 = vsel %vm429, %v404, 0.0
    %v436 = vadd.f32 %v434, %v435
    %v437 = vsel %vm429, %v408, 0.0
    %v438 = vadd.f32 %v436, %v437
    %v439 = vsel %vm429, %v412, 0.0
    %v440 = vadd.f32 %v438, %v439
    %v441 = vsel %vm429, %v416, 0.0
    %v442 = vadd.f32 %v440, %v441
    %v443 = vsel %vm429, %v420, 0.0
    %v444 = vadd.f32 %v442, %v443
    %445 = vadd.xlane.f32.xlu0 %v444
    %v446 = vpop.xlane.xlu0 %445
    %v447 = vadd.f32 %v386, %v446
    %448 = vst.msk [vmem:[#allocation3] sm:$0x1] %vm384, %v447
    // Predicated region
    $region34: #{tpu_custom_call.1} parent=1 // pred_check
      %p449 = pneg %p45
    $region35: #{tpu_custom_call.1} parent=1 // pred_check_branch
      %451 = sbr.rel (%p449) target = $region37
    $region36: #{tpu_custom_call.1} parent=1 // pred_region
      %v452 = vld [vmem:[#allocation3] sm:$0x1]
      %v453 = vld [vmem:[%s4] sm:$0x1]
      %v454 = vadd.f32 %v452, %v453
      %v455 = vld [vmem:[#allocation2] sm:$0x1]
      %v456 = vmul.f32 %v455, 2.0
      %v457 = vsub.f32 %v454, %v456
      %v458 = vmax.f32 %v457, 0.0
      %v459 = vrsqrt.pop %v458
      %v460 = vmul.f32 %v458, %v459
      %vm461 = vcmp.eq.f32.partialorder %v458, inf
      %v462 = vsel %vm461, %v458, %v460
      %vm463 = vcmp.eq.f32.partialorder %v458, 0.0
      %v464 = vand.u32 %v458, 2147483648
      %v465 = vsel %vm463, %v464, %v462
      %v466 = vld [vmem:[%s3] sm:$0x1]
      %v467 = vld [vmem:[%s3 + $0x1] sm:$0x1]
      %v468 = vld [vmem:[%s3 + $0x2] sm:$0x1]
      %v469 = vsub.f32 %v465, %v467
      %v470 = vrcp.pop %v468
      %v471 = vmul.f32 %v469, %v470
      %v472 = vmax.f32 %v471, 0.0
      %v473 = vpow.f32 %v472, %v466
      %v474 = vsub.f32 0.0, %v473
      %v475 = vmul.f32 %v474, 1.442695
      %v476 = vpow.pop %v475
      %v477 = vsub.f32 1.0, %v476
      %v478 = vmul.f32 %v477, %v477
      %v479 = vmul.f32 %v478, %v478
      %v480 = vmul.f32 %v479, %v479
      %v481 = vmul.f32 %v478, %v480
      %v482 = vsub.f32 1.0, %v481
      %v483 = vld [vmem:[%s2] sm:$0x3]
      %v485 = vlaneseq
      %v486 = vshrl.u32 %v485, 7
      %v487 = vsub.s32 0, %v486
      %v488 = vrot.slane %v482, %v487
      %v490 = vmul.f32 %v483, %v488
      %v491 = vmul.f32 %v490, 1.442695
      %v492 = vpow.pop %v491
      %vm493 = vcmask 58368
      %v494 = vsel %vm493, %v492, 0.0
      %495 = vadd.xlane.f32.xlu0 %v494
      %v496 = vpop.xlane.xlu0 %495
      %v497 = vrcp.pop %v496
      %v498 = vmul.f32 %v492, %v497
      %499 = vst.msk [vmem:[#allocation9] sm:$0x3] %vm493, %v498
    $region37: #{tpu_custom_call.1} parent=1 // pred_fallthru
      _
    // Predicated region
    $region38: #{tpu_custom_call.1} parent=1 // pred_check
      _
    $region39: #{tpu_custom_call.1} parent=1 // pred_check_branch
      %501 = sbr.rel (0) target = $region41
    $region40: #{tpu_custom_call.1} parent=1 // pred_region
      %s503 = ssub.s32 32, 32
      %504 = vsyncadd [#allocation6], %s503
      %s506 = sshll.u32 [#allocation9], 4
      %s507 = int_to_ptr.vmem [resolvable:$true] %s506
      %509 = dma.vmem_to_hbm [thread:$0]  %s507, 32, %s5, [#allocation6]
    $region41: #{tpu_custom_call.1} parent=1 // pred_fallthru
      _
    // Predicated region
    $region42: #{tpu_custom_call.1} parent=1 // pred_check
      _
    $region43: #{tpu_custom_call.1} parent=1 // pred_check_branch
      %511 = sbr.rel (0) target = $region45
    $region44: #{tpu_custom_call.1} parent=1 // pred_region
      %512 = dma.done [#allocation6], 32
    $region45: #{tpu_custom_call.1} parent=1 // pred_fallthru
      _
    %513 = vsyncpa [#allocation5], 1
    %514 = vsyncpa [#allocation8], 1
    %515 = vsyncpa [#allocation6], 1

</llo_original>
